<compile_context>
chip_gen: v7x
topology: tpu7x:2x2x1
jax: 0.10.0
libtpu: 0.0.40
codegen_flags: <defaults>
</compile_context>

<pallas_src>
import jax
import jax.numpy as jnp
from jax.experimental import pallas as pl
from jax.experimental.pallas import tpu as pltpu


def _round_up(n, m):
    return -(-n // m) * m


def lstm_kernel(x_ref, wih_ref, whh_ref, b_ref, wd_ref, bd_ref, out_ref):
    """Fused LSTM forward + final dense.

    Shapes (already prepared by the wrapper):
      x_ref   : (T, Bp, 1)   f32   time-major, batch-padded input
      wih_ref : (1, 4H)      f32   W_ih row (input_size == 1)
      whh_ref : (H, 4H)      bf16  W_hh^T (unpadded gate layout)
      b_ref   : (1, 4H)      f32   b_ih + b_hh
      wd_ref  : (1, H)       f32   dense weight row
      bd_ref  : (1, 1)       f32   dense bias
      out_ref : (Bp, 1)      f32
    """
    T = x_ref.shape[0]
    Bp = x_ref.shape[1]
    H = wd_ref.shape[1]

    # Stage the recurrence weight ONCE: (H, 4H) bf16 = 8 vregs, held in the
    # register file across the whole unrolled loop (no per-step VMEM reload).
    whh = whh_ref[...]                      # (H, 4H) bf16
    wih = wih_ref[...]                      # (1, 4H) f32
    b = b_ref[...]                          # (1, 4H) f32

    # h / c live in vregs across the fully unrolled time loop (f32 state).
    h = jnp.zeros((Bp, H), jnp.float32)
    c = jnp.zeros((Bp, H), jnp.float32)

    # T is a small compile-time constant -> static unroll for LLO visibility.
    for t in range(T):
        # Per-step input projection (input_size == 1 -> broadcast multiply on
        # the VPU, independent of h, overlaps with the previous step's MXU).
        xw_t = x_ref[t] * wih + b                                  # (Bp, 4H) f32
        gates = xw_t + jnp.dot(h.astype(jnp.bfloat16), whh,
                               preferred_element_type=jnp.float32)  # (Bp, 4H)
        # i and f share sigmoid -> one full 128-lane EUP pass on [i|f].
        if_sig = jax.nn.sigmoid(gates[:, 0:2 * H])
        i_g = if_sig[:, 0:H]
        f_g = if_sig[:, H:2 * H]
        g_g = jnp.tanh(gates[:, 2 * H:3 * H])
        o_g = jax.nn.sigmoid(gates[:, 3 * H:4 * H])
        c = f_g * c + i_g * g_g
        h = o_g * jnp.tanh(c)

    # Final dense on the last hidden state: VPU multiply + lane reduce
    # (avoids an N=1 MXU pass).
    out_ref[...] = (jnp.sum(h * wd_ref[...], axis=-1, keepdims=True)
                    + bd_ref[...]).astype(out_ref.dtype)


def lstm_model_forward(x, params):
    """x: (B, T, 1) float32 (batch_first, like PyTorch). Returns (B, 1)."""
    B, T, I = x.shape
    assert I == 1, "LSTMModel uses input_size=1"
    H = params["w_hh"].shape[1]

    Bp = _round_up(max(B, 8), 8)   # pad batch to the f32 sublane tile

    # time-major, batch-padded input
    x_tm = jnp.transpose(x, (1, 0, 2)).astype(jnp.float32)      # (T, B, 1)
    x_tm = jnp.pad(x_tm, ((0, 0), (0, Bp - B), (0, 0)))         # (T, Bp, 1)

    wih_row = params["w_ih"].T.reshape(1, 4 * H).astype(jnp.float32)    # (1, 4H)
    whh_bf16 = params["w_hh"].T.astype(jnp.bfloat16)                    # (H, 4H)
    b_row = (params["b_ih"] + params["b_hh"]).reshape(1, 4 * H).astype(jnp.float32)
    wd_row = params["w_dense"].reshape(1, H).astype(jnp.float32)        # (1, H)
    bd = params["b_dense"].reshape(1, 1).astype(jnp.float32)            # (1, 1)

    vmem = pl.BlockSpec(memory_space=pltpu.MemorySpace.VMEM)
    out = pl.pallas_call(
        lstm_kernel,
        out_shape=jax.ShapeDtypeStruct((Bp, 1), jnp.float32),
        in_specs=[vmem] * 6,
        out_specs=vmem,
    )(x_tm, wih_row, whh_bf16, b_row, wd_row, bd)
    return out[:B].astype(x.dtype)


def init_params(key, hidden_size=64, input_size=1):
    """Deterministic init mimicking PyTorch's U(-1/sqrt(H), 1/sqrt(H))."""
    H, I = hidden_size, input_size
    k = 1.0 / jnp.sqrt(jnp.float32(H))
    ks = jax.random.split(key, 6)
    u = lambda kk, shape: jax.random.uniform(kk, shape, jnp.float32, -k, k)
    return {
        "w_ih": u(ks[0], (4 * H, I)),
        "w_hh": u(ks[1], (4 * H, H)),
        "b_ih": u(ks[2], (4 * H,)),
        "b_hh": u(ks[3], (4 * H,)),
        "w_dense": u(ks[4], (1, H)),
        "b_dense": u(ks[5], (1,)),
    }


def lstm_model_reference(x, params):
    """Pure-JAX f32 forward matching the PyTorch module (correctness check)."""
    H = params["w_hh"].shape[1]
    B = x.shape[0]
    wih_row = params["w_ih"].reshape(1, 4 * H)   # input_size == 1
    whh_t = params["w_hh"].T
    b = params["b_ih"] + params["b_hh"]

    def step(carry, x_t):
        h, c = carry
        gates = x_t * wih_row + h @ whh_t + b
        i = jax.nn.sigmoid(gates[:, 0:H])
        f = jax.nn.sigmoid(gates[:, H:2 * H])
        g = jnp.tanh(gates[:, 2 * H:3 * H])
        o = jax.nn.sigmoid(gates[:, 3 * H:4 * H])
        c = f * c + i * g
        h = o * jnp.tanh(c)
        return (h, c), None

    h0 = jnp.zeros((B, H), jnp.float32)
    c0 = jnp.zeros((B, H), jnp.float32)
    (hT, _), _ = jax.lax.scan(step, (h0, c0), jnp.transpose(x, (1, 0, 2)))
    return (jnp.sum(hT * params["w_dense"], axis=-1, keepdims=True)
            + params["b_dense"])


if __name__ == "__main__":
    B, T, I, H = 2, 8, 1, 64   # batch=2, seq=8, input_size=1, hidden=64

    key = jax.random.PRNGKey(0)
    k_x, k_p = jax.random.split(key)
    x = jax.random.normal(k_x, (B, T, I), jnp.float32)
    params = init_params(k_p, hidden_size=H, input_size=I)

    out = lstm_model_forward(x, params)
    out = jax.block_until_ready(out)

    ref = lstm_model_reference(x, params)
    assert out.shape == (B, 1)
    # bf16 MXU operands in the recurrence -> loosened tolerance vs. the pure
    # f32 reference (per review note); f32 state keeps the error ~1e-3.
    assert jnp.allclose(out, ref, atol=2e-2, rtol=2e-2), (out, ref)

    print("KERNEL_OK")
</pallas_src>

<mosaic_0001>
module attributes {stable_mosaic.version = 11 : i64} {
  func.func @lstm_kernel(%arg0: memref<8x8x1xf32, #tpu.memory_space<vmem>>, %arg1: memref<1x256xf32, #tpu.memory_space<vmem>>, %arg2: memref<64x256xbf16, #tpu.memory_space<vmem>>, %arg3: memref<1x256xf32, #tpu.memory_space<vmem>>, %arg4: memref<1x64xf32, #tpu.memory_space<vmem>>, %arg5: memref<1x1xf32, #tpu.memory_space<vmem>>, %arg6: memref<8x1xf32, #tpu.memory_space<vmem>>) attributes {dimension_semantics = [], scalar_prefetch = 0 : i64, scratch_operands = 0 : i64, tpu.core_type = #tpu.core_type<tc>} {
    %c0 = arith.constant 0 : index
    %c0_0 = arith.constant 0 : index
    %0 = vector.load %arg2[%c0, %c0_0] : memref<64x256xbf16, #tpu.memory_space<vmem>>, vector<64x256xbf16>
    %c0_1 = arith.constant 0 : index
    %c0_2 = arith.constant 0 : index
    %1 = vector.load %arg1[%c0_1, %c0_2] : memref<1x256xf32, #tpu.memory_space<vmem>>, vector<1x256xf32>
    %c0_3 = arith.constant 0 : index
    %c0_4 = arith.constant 0 : index
    %2 = vector.load %arg3[%c0_3, %c0_4] : memref<1x256xf32, #tpu.memory_space<vmem>>, vector<1x256xf32>
    %cst = arith.constant 0.000000e+00 : f32
    %3 = vector.broadcast %cst : f32 to vector<8x64xf32>
    %cst_5 = arith.constant 0.000000e+00 : f32
    %4 = vector.broadcast %cst_5 : f32 to vector<8x64xf32>
    %c0_6 = arith.constant 0 : index
    %c0_7 = arith.constant 0 : index
    %c0_8 = arith.constant 0 : index
    %5 = vector.load %arg0[%c0_6, %c0_7, %c0_8] : memref<8x8x1xf32, #tpu.memory_space<vmem>>, vector<1x8x1xf32>
    %6 = vector.shape_cast %5 : vector<1x8x1xf32> to vector<8x1xf32>
    %7 = vector.broadcast %6 : vector<8x1xf32> to vector<8x256xf32>
    %8 = vector.broadcast %1 : vector<1x256xf32> to vector<8x256xf32>
    %9 = arith.mulf %7, %8 : vector<8x256xf32>
    %10 = vector.broadcast %2 : vector<1x256xf32> to vector<8x256xf32>
    %11 = arith.addf %9, %10 : vector<8x256xf32>
    %12 = arith.truncf %3 : vector<8x64xf32> to vector<8x64xbf16>
    %cst_9 = arith.constant dense<0.000000e+00> : vector<8x256xf32>
    %13 = tpu.matmul %12, %0, %cst_9 {dimension_numbers = #tpu.dot_dimension_numbers<[1], [0], [0], [1], [0, 0, 1, 1], [], []>} : vector<8x64xbf16>, vector<64x256xbf16>, vector<8x256xf32> -> vector<8x256xf32>
    %14 = arith.addf %11, %13 : vector<8x256xf32>
    %15 = vector.extract_strided_slice %14 {offsets = [0, 0], sizes = [8, 128], strides = [1, 1]} : vector<8x256xf32> to vector<8x128xf32>
    %16 = arith.negf %15 : vector<8x128xf32>
    %17 = math.exp %16 : vector<8x128xf32>
    %cst_10 = arith.constant 1.000000e+00 : f32
    %18 = vector.broadcast %cst_10 : f32 to vector<8x128xf32>
    %19 = arith.addf %18, %17 : vector<8x128xf32>
    %20 = arith.divf %18, %19 : vector<8x128xf32>
    %21 = vector.extract_strided_slice %20 {offsets = [0, 0], sizes = [8, 64], strides = [1, 1]} : vector<8x128xf32> to vector<8x64xf32>
    %22 = vector.extract_strided_slice %20 {offsets = [0, 64], sizes = [8, 64], strides = [1, 1]} : vector<8x128xf32> to vector<8x64xf32>
    %23 = vector.extract_strided_slice %14 {offsets = [0, 128], sizes = [8, 64], strides = [1, 1]} : vector<8x256xf32> to vector<8x64xf32>
    %24 = math.tanh %23 : vector<8x64xf32>
    %25 = vector.extract_strided_slice %14 {offsets = [0, 192], sizes = [8, 64], strides = [1, 1]} : vector<8x256xf32> to vector<8x64xf32>
    %26 = arith.negf %25 : vector<8x64xf32>
    %27 = math.exp %26 : vector<8x64xf32>
    %cst_11 = arith.constant 1.000000e+00 : f32
    %28 = vector.broadcast %cst_11 : f32 to vector<8x64xf32>
    %29 = arith.addf %28, %27 : vector<8x64xf32>
    %30 = arith.divf %28, %29 : vector<8x64xf32>
    %31 = arith.mulf %22, %4 : vector<8x64xf32>
    %32 = arith.mulf %21, %24 : vector<8x64xf32>
    %33 = arith.addf %31, %32 : vector<8x64xf32>
    %34 = math.tanh %33 : vector<8x64xf32>
    %35 = arith.mulf %30, %34 : vector<8x64xf32>
    %c1 = arith.constant 1 : index
    %c0_12 = arith.constant 0 : index
    %c0_13 = arith.constant 0 : index
    %36 = vector.load %arg0[%c1, %c0_12, %c0_13] : memref<8x8x1xf32, #tpu.memory_space<vmem>>, vector<1x8x1xf32>
    %37 = vector.shape_cast %36 : vector<1x8x1xf32> to vector<8x1xf32>
    %38 = vector.broadcast %37 : vector<8x1xf32> to vector<8x256xf32>
    %39 = vector.broadcast %1 : vector<1x256xf32> to vector<8x256xf32>
    %40 = arith.mulf %38, %39 : vector<8x256xf32>
    %41 = vector.broadcast %2 : vector<1x256xf32> to vector<8x256xf32>
    %42 = arith.addf %40, %41 : vector<8x256xf32>
    %43 = arith.truncf %35 : vector<8x64xf32> to vector<8x64xbf16>
    %cst_14 = arith.constant dense<0.000000e+00> : vector<8x256xf32>
    %44 = tpu.matmul %43, %0, %cst_14 {dimension_numbers = #tpu.dot_dimension_numbers<[1], [0], [0], [1], [0, 0, 1, 1], [], []>} : vector<8x64xbf16>, vector<64x256xbf16>, vector<8x256xf32> -> vector<8x256xf32>
    %45 = arith.addf %42, %44 : vector<8x256xf32>
    %46 = vector.extract_strided_slice %45 {offsets = [0, 0], sizes = [8, 128], strides = [1, 1]} : vector<8x256xf32> to vector<8x128xf32>
    %47 = arith.negf %46 : vector<8x128xf32>
    %48 = math.exp %47 : vector<8x128xf32>
    %cst_15 = arith.constant 1.000000e+00 : f32
    %49 = vector.broadcast %cst_15 : f32 to vector<8x128xf32>
    %50 = arith.addf %49, %48 : vector<8x128xf32>
    %51 = arith.divf %49, %50 : vector<8x128xf32>
    %52 = vector.extract_strided_slice %51 {offsets = [0, 0], sizes = [8, 64], strides = [1, 1]} : vector<8x128xf32> to vector<8x64xf32>
    %53 = vector.extract_strided_slice %51 {offsets = [0, 64], sizes = [8, 64], strides = [1, 1]} : vector<8x128xf32> to vector<8x64xf32>
    %54 = vector.extract_strided_slice %45 {offsets = [0, 128], sizes = [8, 64], strides = [1, 1]} : vector<8x256xf32> to vector<8x64xf32>
    %55 = math.tanh %54 : vector<8x64xf32>
    %56 = vector.extract_strided_slice %45 {offsets = [0, 192], sizes = [8, 64], strides = [1, 1]} : vector<8x256xf32> to vector<8x64xf32>
    %57 = arith.negf %56 : vector<8x64xf32>
    %58 = math.exp %57 : vector<8x64xf32>
    %cst_16 = arith.constant 1.000000e+00 : f32
    %59 = vector.broadcast %cst_16 : f32 to vector<8x64xf32>
    %60 = arith.addf %59, %58 : vector<8x64xf32>
    %61 = arith.divf %59, %60 : vector<8x64xf32>
    %62 = arith.mulf %53, %33 : vector<8x64xf32>
    %63 = arith.mulf %52, %55 : vector<8x64xf32>
    %64 = arith.addf %62, %63 : vector<8x64xf32>
    %65 = math.tanh %64 : vector<8x64xf32>
    %66 = arith.mulf %61, %65 : vector<8x64xf32>
    %c2 = arith.constant 2 : index
    %c0_17 = arith.constant 0 : index
    %c0_18 = arith.constant 0 : index
    %67 = vector.load %arg0[%c2, %c0_17, %c0_18] : memref<8x8x1xf32, #tpu.memory_space<vmem>>, vector<1x8x1xf32>
    %68 = vector.shape_cast %67 : vector<1x8x1xf32> to vector<8x1xf32>
    %69 = vector.broadcast %68 : vector<8x1xf32> to vector<8x256xf32>
    %70 = vector.broadcast %1 : vector<1x256xf32> to vector<8x256xf32>
    %71 = arith.mulf %69, %70 : vector<8x256xf32>
    %72 = vector.broadcast %2 : vector<1x256xf32> to vector<8x256xf32>
    %73 = arith.addf %71, %72 : vector<8x256xf32>
    %74 = arith.truncf %66 : vector<8x64xf32> to vector<8x64xbf16>
    %cst_19 = arith.constant dense<0.000000e+00> : vector<8x256xf32>
    %75 = tpu.matmul %74, %0, %cst_19 {dimension_numbers = #tpu.dot_dimension_numbers<[1], [0], [0], [1], [0, 0, 1, 1], [], []>} : vector<8x64xbf16>, vector<64x256xbf16>, vector<8x256xf32> -> vector<8x256xf32>
    %76 = arith.addf %73, %75 : vector<8x256xf32>
    %77 = vector.extract_strided_slice %76 {offsets = [0, 0], sizes = [8, 128], strides = [1, 1]} : vector<8x256xf32> to vector<8x128xf32>
    %78 = arith.negf %77 : vector<8x128xf32>
    %79 = math.exp %78 : vector<8x128xf32>
    %cst_20 = arith.constant 1.000000e+00 : f32
    %80 = vector.broadcast %cst_20 : f32 to vector<8x128xf32>
    %81 = arith.addf %80, %79 : vector<8x128xf32>
    %82 = arith.divf %80, %81 : vector<8x128xf32>
    %83 = vector.extract_strided_slice %82 {offsets = [0, 0], sizes = [8, 64], strides = [1, 1]} : vector<8x128xf32> to vector<8x64xf32>
    %84 = vector.extract_strided_slice %82 {offsets = [0, 64], sizes = [8, 64], strides = [1, 1]} : vector<8x128xf32> to vector<8x64xf32>
    %85 = vector.extract_strided_slice %76 {offsets = [0, 128], sizes = [8, 64], strides = [1, 1]} : vector<8x256xf32> to vector<8x64xf32>
    %86 = math.tanh %85 : vector<8x64xf32>
    %87 = vector.extract_strided_slice %76 {offsets = [0, 192], sizes = [8, 64], strides = [1, 1]} : vector<8x256xf32> to vector<8x64xf32>
    %88 = arith.negf %87 : vector<8x64xf32>
    %89 = math.exp %88 : vector<8x64xf32>
    %cst_21 = arith.constant 1.000000e+00 : f32
    %90 = vector.broadcast %cst_21 : f32 to vector<8x64xf32>
    %91 = arith.addf %90, %89 : vector<8x64xf32>
    %92 = arith.divf %90, %91 : vector<8x64xf32>
    %93 = arith.mulf %84, %64 : vector<8x64xf32>
    %94 = arith.mulf %83, %86 : vector<8x64xf32>
    %95 = arith.addf %93, %94 : vector<8x64xf32>
    %96 = math.tanh %95 : vector<8x64xf32>
    %97 = arith.mulf %92, %96 : vector<8x64xf32>
    %c3 = arith.constant 3 : index
    %c0_22 = arith.constant 0 : index
    %c0_23 = arith.constant 0 : index
    %98 = vector.load %arg0[%c3, %c0_22, %c0_23] : memref<8x8x1xf32, #tpu.memory_space<vmem>>, vector<1x8x1xf32>
    %99 = vector.shape_cast %98 : vector<1x8x1xf32> to vector<8x1xf32>
    %100 = vector.broadcast %99 : vector<8x1xf32> to vector<8x256xf32>
    %101 = vector.broadcast %1 : vector<1x256xf32> to vector<8x256xf32>
    %102 = arith.mulf %100, %101 : vector<8x256xf32>
    %103 = vector.broadcast %2 : vector<1x256xf32> to vector<8x256xf32>
    %104 = arith.addf %102, %103 : vector<8x256xf32>
    %105 = arith.truncf %97 : vector<8x64xf32> to vector<8x64xbf16>
    %cst_24 = arith.constant dense<0.000000e+00> : vector<8x256xf32>
    %106 = tpu.matmul %105, %0, %cst_24 {dimension_numbers = #tpu.dot_dimension_numbers<[1], [0], [0], [1], [0, 0, 1, 1], [], []>} : vector<8x64xbf16>, vector<64x256xbf16>, vector<8x256xf32> -> vector<8x256xf32>
    %107 = arith.addf %104, %106 : vector<8x256xf32>
    %108 = vector.extract_strided_slice %107 {offsets = [0, 0], sizes = [8, 128], strides = [1, 1]} : vector<8x256xf32> to vector<8x128xf32>
    %109 = arith.negf %108 : vector<8x128xf32>
    %110 = math.exp %109 : vector<8x128xf32>
    %cst_25 = arith.constant 1.000000e+00 : f32
    %111 = vector.broadcast %cst_25 : f32 to vector<8x128xf32>
    %112 = arith.addf %111, %110 : vector<8x128xf32>
    %113 = arith.divf %111, %112 : vector<8x128xf32>
    %114 = vector.extract_strided_slice %113 {offsets = [0, 0], sizes = [8, 64], strides = [1, 1]} : vector<8x128xf32> to vector<8x64xf32>
    %115 = vector.extract_strided_slice %113 {offsets = [0, 64], sizes = [8, 64], strides = [1, 1]} : vector<8x128xf32> to vector<8x64xf32>
    %116 = vector.extract_strided_slice %107 {offsets = [0, 128], sizes = [8, 64], strides = [1, 1]} : vector<8x256xf32> to vector<8x64xf32>
    %117 = math.tanh %116 : vector<8x64xf32>
    %118 = vector.extract_strided_slice %107 {offsets = [0, 192], sizes = [8, 64], strides = [1, 1]} : vector<8x256xf32> to vector<8x64xf32>
    %119 = arith.negf %118 : vector<8x64xf32>
    %120 = math.exp %119 : vector<8x64xf32>
    %cst_26 = arith.constant 1.000000e+00 : f32
    %121 = vector.broadcast %cst_26 : f32 to vector<8x64xf32>
    %122 = arith.addf %121, %120 : vector<8x64xf32>
    %123 = arith.divf %121, %122 : vector<8x64xf32>
    %124 = arith.mulf %115, %95 : vector<8x64xf32>
    %125 = arith.mulf %114, %117 : vector<8x64xf32>
    %126 = arith.addf %124, %125 : vector<8x64xf32>
    %127 = math.tanh %126 : vector<8x64xf32>
    %128 = arith.mulf %123, %127 : vector<8x64xf32>
    %c4 = arith.constant 4 : index
    %c0_27 = arith.constant 0 : index
    %c0_28 = arith.constant 0 : index
    %129 = vector.load %arg0[%c4, %c0_27, %c0_28] : memref<8x8x1xf32, #tpu.memory_space<vmem>>, vector<1x8x1xf32>
    %130 = vector.shape_cast %129 : vector<1x8x1xf32> to vector<8x1xf32>
    %131 = vector.broadcast %130 : vector<8x1xf32> to vector<8x256xf32>
    %132 = vector.broadcast %1 : vector<1x256xf32> to vector<8x256xf32>
    %133 = arith.mulf %131, %132 : vector<8x256xf32>
    %134 = vector.broadcast %2 : vector<1x256xf32> to vector<8x256xf32>
    %135 = arith.addf %133, %134 : vector<8x256xf32>
    %136 = arith.truncf %128 : vector<8x64xf32> to vector<8x64xbf16>
    %cst_29 = arith.constant dense<0.000000e+00> : vector<8x256xf32>
    %137 = tpu.matmul %136, %0, %cst_29 {dimension_numbers = #tpu.dot_dimension_numbers<[1], [0], [0], [1], [0, 0, 1, 1], [], []>} : vector<8x64xbf16>, vector<64x256xbf16>, vector<8x256xf32> -> vector<8x256xf32>
    %138 = arith.addf %135, %137 : vector<8x256xf32>
    %139 = vector.extract_strided_slice %138 {offsets = [0, 0], sizes = [8, 128], strides = [1, 1]} : vector<8x256xf32> to vector<8x128xf32>
    %140 = arith.negf %139 : vector<8x128xf32>
    %141 = math.exp %140 : vector<8x128xf32>
    %cst_30 = arith.constant 1.000000e+00 : f32
    %142 = vector.broadcast %cst_30 : f32 to vector<8x128xf32>
    %143 = arith.addf %142, %141 : vector<8x128xf32>
    %144 = arith.divf %142, %143 : vector<8x128xf32>
    %145 = vector.extract_strided_slice %144 {offsets = [0, 0], sizes = [8, 64], strides = [1, 1]} : vector<8x128xf32> to vector<8x64xf32>
    %146 = vector.extract_strided_slice %144 {offsets = [0, 64], sizes = [8, 64], strides = [1, 1]} : vector<8x128xf32> to vector<8x64xf32>
    %147 = vector.extract_strided_slice %138 {offsets = [0, 128], sizes = [8, 64], strides = [1, 1]} : vector<8x256xf32> to vector<8x64xf32>
    %148 = math.tanh %147 : vector<8x64xf32>
    %149 = vector.extract_strided_slice %138 {offsets = [0, 192], sizes = [8, 64], strides = [1, 1]} : vector<8x256xf32> to vector<8x64xf32>
    %150 = arith.negf %149 : vector<8x64xf32>
    %151 = math.exp %150 : vector<8x64xf32>
    %cst_31 = arith.constant 1.000000e+00 : f32
    %152 = vector.broadcast %cst_31 : f32 to vector<8x64xf32>
    %153 = arith.addf %152, %151 : vector<8x64xf32>
    %154 = arith.divf %152, %153 : vector<8x64xf32>
    %155 = arith.mulf %146, %126 : vector<8x64xf32>
    %156 = arith.mulf %145, %148 : vector<8x64xf32>
    %157 = arith.addf %155, %156 : vector<8x64xf32>
    %158 = math.tanh %157 : vector<8x64xf32>
    %159 = arith.mulf %154, %158 : vector<8x64xf32>
    %c5 = arith.constant 5 : index
    %c0_32 = arith.constant 0 : index
    %c0_33 = arith.constant 0 : index
    %160 = vector.load %arg0[%c5, %c0_32, %c0_33] : memref<8x8x1xf32, #tpu.memory_space<vmem>>, vector<1x8x1xf32>
    %161 = vector.shape_cast %160 : vector<1x8x1xf32> to vector<8x1xf32>
    %162 = vector.broadcast %161 : vector<8x1xf32> to vector<8x256xf32>
    %163 = vector.broadcast %1 : vector<1x256xf32> to vector<8x256xf32>
    %164 = arith.mulf %162, %163 : vector<8x256xf32>
    %165 = vector.broadcast %2 : vector<1x256xf32> to vector<8x256xf32>
    %166 = arith.addf %164, %165 : vector<8x256xf32>
    %167 = arith.truncf %159 : vector<8x64xf32> to vector<8x64xbf16>
    %cst_34 = arith.constant dense<0.000000e+00> : vector<8x256xf32>
    %168 = tpu.matmul %167, %0, %cst_34 {dimension_numbers = #tpu.dot_dimension_numbers<[1], [0], [0], [1], [0, 0, 1, 1], [], []>} : vector<8x64xbf16>, vector<64x256xbf16>, vector<8x256xf32> -> vector<8x256xf32>
    %169 = arith.addf %166, %168 : vector<8x256xf32>
    %170 = vector.extract_strided_slice %169 {offsets = [0, 0], sizes = [8, 128], strides = [1, 1]} : vector<8x256xf32> to vector<8x128xf32>
    %171 = arith.negf %170 : vector<8x128xf32>
    %172 = math.exp %171 : vector<8x128xf32>
    %cst_35 = arith.constant 1.000000e+00 : f32
    %173 = vector.broadcast %cst_35 : f32 to vector<8x128xf32>
    %174 = arith.addf %173, %172 : vector<8x128xf32>
    %175 = arith.divf %173, %174 : vector<8x128xf32>
    %176 = vector.extract_strided_slice %175 {offsets = [0, 0], sizes = [8, 64], strides = [1, 1]} : vector<8x128xf32> to vector<8x64xf32>
    %177 = vector.extract_strided_slice %175 {offsets = [0, 64], sizes = [8, 64], strides = [1, 1]} : vector<8x128xf32> to vector<8x64xf32>
    %178 = vector.extract_strided_slice %169 {offsets = [0, 128], sizes = [8, 64], strides = [1, 1]} : vector<8x256xf32> to vector<8x64xf32>
    %179 = math.tanh %178 : vector<8x64xf32>
    %180 = vector.extract_strided_slice %169 {offsets = [0, 192], sizes = [8, 64], strides = [1, 1]} : vector<8x256xf32> to vector<8x64xf32>
    %181 = arith.negf %180 : vector<8x64xf32>
    %182 = math.exp %181 : vector<8x64xf32>
    %cst_36 = arith.constant 1.000000e+00 : f32
    %183 = vector.broadcast %cst_36 : f32 to vector<8x64xf32>
    %184 = arith.addf %183, %182 : vector<8x64xf32>
    %185 = arith.divf %183, %184 : vector<8x64xf32>
    %186 = arith.mulf %177, %157 : vector<8x64xf32>
    %187 = arith.mulf %176, %179 : vector<8x64xf32>
    %188 = arith.addf %186, %187 : vector<8x64xf32>
    %189 = math.tanh %188 : vector<8x64xf32>
    %190 = arith.mulf %185, %189 : vector<8x64xf32>
    %c6 = arith.constant 6 : index
    %c0_37 = arith.constant 0 : index
    %c0_38 = arith.constant 0 : index
    %191 = vector.load %arg0[%c6, %c0_37, %c0_38] : memref<8x8x1xf32, #tpu.memory_space<vmem>>, vector<1x8x1xf32>
    %192 = vector.shape_cast %191 : vector<1x8x1xf32> to vector<8x1xf32>
    %193 = vector.broadcast %192 : vector<8x1xf32> to vector<8x256xf32>
    %194 = vector.broadcast %1 : vector<1x256xf32> to vector<8x256xf32>
    %195 = arith.mulf %193, %194 : vector<8x256xf32>
    %196 = vector.broadcast %2 : vector<1x256xf32> to vector<8x256xf32>
    %197 = arith.addf %195, %196 : vector<8x256xf32>
    %198 = arith.truncf %190 : vector<8x64xf32> to vector<8x64xbf16>
    %cst_39 = arith.constant dense<0.000000e+00> : vector<8x256xf32>
    %199 = tpu.matmul %198, %0, %cst_39 {dimension_numbers = #tpu.dot_dimension_numbers<[1], [0], [0], [1], [0, 0, 1, 1], [], []>} : vector<8x64xbf16>, vector<64x256xbf16>, vector<8x256xf32> -> vector<8x256xf32>
    %200 = arith.addf %197, %199 : vector<8x256xf32>
    %201 = vector.extract_strided_slice %200 {offsets = [0, 0], sizes = [8, 128], strides = [1, 1]} : vector<8x256xf32> to vector<8x128xf32>
    %202 = arith.negf %201 : vector<8x128xf32>
    %203 = math.exp %202 : vector<8x128xf32>
    %cst_40 = arith.constant 1.000000e+00 : f32
    %204 = vector.broadcast %cst_40 : f32 to vector<8x128xf32>
    %205 = arith.addf %204, %203 : vector<8x128xf32>
    %206 = arith.divf %204, %205 : vector<8x128xf32>
    %207 = vector.extract_strided_slice %206 {offsets = [0, 0], sizes = [8, 64], strides = [1, 1]} : vector<8x128xf32> to vector<8x64xf32>
    %208 = vector.extract_strided_slice %206 {offsets = [0, 64], sizes = [8, 64], strides = [1, 1]} : vector<8x128xf32> to vector<8x64xf32>
    %209 = vector.extract_strided_slice %200 {offsets = [0, 128], sizes = [8, 64], strides = [1, 1]} : vector<8x256xf32> to vector<8x64xf32>
    %210 = math.tanh %209 : vector<8x64xf32>
    %211 = vector.extract_strided_slice %200 {offsets = [0, 192], sizes = [8, 64], strides = [1, 1]} : vector<8x256xf32> to vector<8x64xf32>
    %212 = arith.negf %211 : vector<8x64xf32>
    %213 = math.exp %212 : vector<8x64xf32>
    %cst_41 = arith.constant 1.000000e+00 : f32
    %214 = vector.broadcast %cst_41 : f32 to vector<8x64xf32>
    %215 = arith.addf %214, %213 : vector<8x64xf32>
    %216 = arith.divf %214, %215 : vector<8x64xf32>
    %217 = arith.mulf %208, %188 : vector<8x64xf32>
    %218 = arith.mulf %207, %210 : vector<8x64xf32>
    %219 = arith.addf %217, %218 : vector<8x64xf32>
    %220 = math.tanh %219 : vector<8x64xf32>
    %221 = arith.mulf %216, %220 : vector<8x64xf32>
    %c7 = arith.constant 7 : index
    %c0_42 = arith.constant 0 : index
    %c0_43 = arith.constant 0 : index
    %222 = vector.load %arg0[%c7, %c0_42, %c0_43] : memref<8x8x1xf32, #tpu.memory_space<vmem>>, vector<1x8x1xf32>
    %223 = vector.shape_cast %222 : vector<1x8x1xf32> to vector<8x1xf32>
    %224 = vector.broadcast %223 : vector<8x1xf32> to vector<8x256xf32>
    %225 = vector.broadcast %1 : vector<1x256xf32> to vector<8x256xf32>
    %226 = arith.mulf %224, %225 : vector<8x256xf32>
    %227 = vector.broadcast %2 : vector<1x256xf32> to vector<8x256xf32>
    %228 = arith.addf %226, %227 : vector<8x256xf32>
    %229 = arith.truncf %221 : vector<8x64xf32> to vector<8x64xbf16>
    %cst_44 = arith.constant dense<0.000000e+00> : vector<8x256xf32>
    %230 = tpu.matmul %229, %0, %cst_44 {dimension_numbers = #tpu.dot_dimension_numbers<[1], [0], [0], [1], [0, 0, 1, 1], [], []>} : vector<8x64xbf16>, vector<64x256xbf16>, vector<8x256xf32> -> vector<8x256xf32>
    %231 = arith.addf %228, %230 : vector<8x256xf32>
    %232 = vector.extract_strided_slice %231 {offsets = [0, 0], sizes = [8, 128], strides = [1, 1]} : vector<8x256xf32> to vector<8x128xf32>
    %233 = arith.negf %232 : vector<8x128xf32>
    %234 = math.exp %233 : vector<8x128xf32>
    %cst_45 = arith.constant 1.000000e+00 : f32
    %235 = vector.broadcast %cst_45 : f32 to vector<8x128xf32>
    %236 = arith.addf %235, %234 : vector<8x128xf32>
    %237 = arith.divf %235, %236 : vector<8x128xf32>
    %238 = vector.extract_strided_slice %237 {offsets = [0, 0], sizes = [8, 64], strides = [1, 1]} : vector<8x128xf32> to vector<8x64xf32>
    %239 = vector.extract_strided_slice %237 {offsets = [0, 64], sizes = [8, 64], strides = [1, 1]} : vector<8x128xf32> to vector<8x64xf32>
    %240 = vector.extract_strided_slice %231 {offsets = [0, 128], sizes = [8, 64], strides = [1, 1]} : vector<8x256xf32> to vector<8x64xf32>
    %241 = math.tanh %240 : vector<8x64xf32>
    %242 = vector.extract_strided_slice %231 {offsets = [0, 192], sizes = [8, 64], strides = [1, 1]} : vector<8x256xf32> to vector<8x64xf32>
    %243 = arith.negf %242 : vector<8x64xf32>
    %244 = math.exp %243 : vector<8x64xf32>
    %cst_46 = arith.constant 1.000000e+00 : f32
    %245 = vector.broadcast %cst_46 : f32 to vector<8x64xf32>
    %246 = arith.addf %245, %244 : vector<8x64xf32>
    %247 = arith.divf %245, %246 : vector<8x64xf32>
    %248 = arith.mulf %239, %219 : vector<8x64xf32>
    %249 = arith.mulf %238, %241 : vector<8x64xf32>
    %250 = arith.addf %248, %249 : vector<8x64xf32>
    %251 = math.tanh %250 : vector<8x64xf32>
    %252 = arith.mulf %247, %251 : vector<8x64xf32>
    %c0_47 = arith.constant 0 : index
    %c0_48 = arith.constant 0 : index
    %253 = vector.load %arg4[%c0_47, %c0_48] : memref<1x64xf32, #tpu.memory_space<vmem>>, vector<1x64xf32>
    %254 = vector.broadcast %253 : vector<1x64xf32> to vector<8x64xf32>
    %255 = arith.mulf %252, %254 : vector<8x64xf32>
    %cst_49 = arith.constant dense<0.000000e+00> : vector<8xf32>
    %256 = vector.multi_reduction <add>, %255, %cst_49 [1] : vector<8x64xf32> to vector<8xf32>
    %257 = vector.shape_cast %256 : vector<8xf32> to vector<8x1xf32>
    %c0_50 = arith.constant 0 : index
    %c0_51 = arith.constant 0 : index
    %258 = vector.load %arg5[%c0_50, %c0_51] : memref<1x1xf32, #tpu.memory_space<vmem>>, vector<1x1xf32>
    %259 = vector.broadcast %258 : vector<1x1xf32> to vector<8x1xf32>
    %260 = arith.addf %257, %259 : vector<8x1xf32>
    %c0_52 = arith.constant 0 : index
    %c0_53 = arith.constant 0 : index
    %261 = vector.load %arg6[%c0_52, %c0_53] : memref<8x1xf32, #tpu.memory_space<vmem>>, vector<8x1xf32>
    tpu.vector_store %arg6[%c0_52, %c0_53], %260 {strides = array<i32>} : memref<8x1xf32, #tpu.memory_space<vmem>>, vector<8x1xf32>,
    return
  }
}

</mosaic_0001>

<llo_original>
// kernel: tpu_custom_call.1
$region0: #{tpu_custom_call.1}
  #allocation0 [shape = 'u32[]', space=smem, size = 0x4, offset = 0x4, fixed_abs, tag = 'smem constant byte address 0x4 - core index']
  #allocation1 [shape = 'u32[144,128]{1,0:T(1,128)}', space=vmem, size = 0x12000, scoped, tag = 'internal scratch']
  #allocation2 [shape = 'f32[1,1]{1,0:T(1,128)S(1)}', space=vmem, size = 0x200, scoped, tag = 'scoped memory for tpu_custom_call.1']
  %s0 = inlined_call_operand.vmem [shape: f32[8,8,1], index: 0, kind: input, shape index: {}]
  %s1 = inlined_call_operand.vmem [shape: f32[1,256], index: 1, kind: input, shape index: {}]
  %s2 = inlined_call_operand.vmem [shape: bf16[64,256], index: 2, kind: input, shape index: {}]
  %s3 = inlined_call_operand.vmem [shape: f32[1,256], index: 3, kind: input, shape index: {}]
  %s4 = inlined_call_operand.vmem [shape: f32[1,64], index: 4, kind: input, shape index: {}]
  %s5 = inlined_call_operand.<no memory space> [shape: f32[1,1], index: 5, kind: input, shape index: {}]
  %s6 = inlined_call_operand.vmem [shape: f32[8,1], index: 6, kind: output, shape index: {}]
  %s7 = sld [smem:[#allocation0]]
  $region34: #{tpu_custom_call.1} parent=0
    _
  %s9 = ssub.s32 1, %s7
  %s10 = scalar_select 0, %s9, %s7
  %v11 = vstv %s5
  %12 = vst [vmem:[#allocation2] sm:$0x1] %v11
  // Predicated region
  $region2: #{tpu_custom_call.1} parent=0 // pred_check
    _
  $region3: #{tpu_custom_call.1} parent=0 // pred_check_branch
    %14 = sbr.rel (0) target = $region5
  $region4: #{tpu_custom_call.1} parent=0 // pred_region
    _
  $region5: #{tpu_custom_call.1} parent=0 // pred_fallthru
    _
  // Predicated region
  $region6: #{tpu_custom_call.1} parent=0 // pred_check
    _
  $region7: #{tpu_custom_call.1} parent=0 // pred_check_branch
    %16 = sbr.rel (0) target = $region9
  $region8: #{tpu_custom_call.1} parent=0 // pred_region
    _
  $region9: #{tpu_custom_call.1} parent=0 // pred_fallthru
    _
  // Predicated region
  $region10: #{tpu_custom_call.1} parent=0 // pred_check
    _
  $region11: #{tpu_custom_call.1} parent=0 // pred_check_branch
    %18 = sbr.rel (0) target = $region13
  $region12: #{tpu_custom_call.1} parent=0 // pred_region
    _
  $region13: #{tpu_custom_call.1} parent=0 // pred_fallthru
    _
  // Predicated region
  $region14: #{tpu_custom_call.1} parent=0 // pred_check
    _
  $region15: #{tpu_custom_call.1} parent=0 // pred_check_branch
    %20 = sbr.rel (0) target = $region17
  $region16: #{tpu_custom_call.1} parent=0 // pred_region
    _
  $region17: #{tpu_custom_call.1} parent=0 // pred_fallthru
    _
  // Predicated region
  $region18: #{tpu_custom_call.1} parent=0 // pred_check
    _
  $region19: #{tpu_custom_call.1} parent=0 // pred_check_branch
    %22 = sbr.rel (0) target = $region21
  $region20: #{tpu_custom_call.1} parent=0 // pred_region
    _
  $region21: #{tpu_custom_call.1} parent=0 // pred_fallthru
    _
  // Predicated region
  $region22: #{tpu_custom_call.1} parent=0 // pred_check
    _
  $region23: #{tpu_custom_call.1} parent=0 // pred_check_branch
    %24 = sbr.rel (0) target = $region25
  $region24: #{tpu_custom_call.1} parent=0 // pred_region
    _
  $region25: #{tpu_custom_call.1} parent=0 // pred_fallthru
    _
  %v26 = vld [vmem:[%s2] sm:$0xff]
  %v27 = vld [vmem:[%s2 + $0x8] sm:$0xff]
  %v28 = vld [vmem:[%s2 + $0x10] sm:$0xff]
  %v29 = vld [vmem:[%s2 + $0x18] sm:$0xff]
  %v30 = vld [vmem:[%s2 + $0x20] sm:$0xff]
  %v31 = vld [vmem:[%s2 + $0x28] sm:$0xff]
  %v32 = vld [vmem:[%s2 + $0x30] sm:$0xff]
  %v33 = vld [vmem:[%s2 + $0x38] sm:$0xff]
  %v34 = vld [vmem:[%s1] sm:$0x3]
  %v35 = vld [vmem:[%s3] sm:$0x3]
  %v36 = vld [vmem:[%s0] sm:$0xff]
  %38 = vset.pattern.permute.xlu0 0
  %39 = vperm.xlu0 %38, %v36
  %v40 = vpop.permute.xlu0 %39
  %v43 = vlaneseq
  %v44 = vshrl.u32 %v43, 7
  %v45 = vsub.s32 0, %v44
  %v46 = vrot.slane %v34, %v45
  %v47 = vlaneseq
  %v48 = vshrl.u32 %v47, 7
  %v49 = vsub.s32 1, %v48
  %v50 = vrot.slane %v34, %v49
  %v53 = vmul.f32 %v40, %v46
  %v54 = vmul.f32 %v40, %v50
  %v56 = vlaneseq
  %v57 = vshrl.u32 %v56, 7
  %v58 = vsub.s32 0, %v57
  %v59 = vrot.slane %v35, %v58
  %v60 = vlaneseq
  %v61 = vshrl.u32 %v60, 7
  %v62 = vsub.s32 1, %v61
  %v63 = vrot.slane %v35, %v62
  %v66 = vadd.f32 %v53, %v59
  %v67 = vadd.f32 %v54, %v63
  %v76 = vunpack.c.l.b16 %v26
  %v77 = vunpack.c.h.b16 %v26
  %v78 = vunpack.c.l.b16 %v27
  %v79 = vunpack.c.h.b16 %v27
  %v80 = vunpack.c.l.b16 %v28
  %v81 = vunpack.c.h.b16 %v28
  %v82 = vunpack.c.l.b16 %v29
  %v83 = vunpack.c.h.b16 %v29
  %v84 = vunpack.c.l.b16 %v30
  %v85 = vunpack.c.h.b16 %v30
  %v86 = vunpack.c.l.b16 %v31
  %v87 = vunpack.c.h.b16 %v31
  %v88 = vunpack.c.l.b16 %v32
  %v89 = vunpack.c.h.b16 %v32
  %v90 = vunpack.c.l.b16 %v33
  %v91 = vunpack.c.h.b16 %v33
  %v92 = vpack.c.b16 %v78, %v76
  %v93 = vpack.c.b16 %v79, %v77
  %v94 = vpack.c.b16 %v82, %v80
  %v95 = vpack.c.b16 %v83, %v81
  %v96 = vpack.c.b16 %v86, %v84
  %v97 = vpack.c.b16 %v87, %v85
  %v98 = vpack.c.b16 %v90, %v88
  %v99 = vpack.c.b16 %v91, %v89
  %vm108 = vcmask 523264
  %v110 = vsel %vm108, 0, 0
  %112 = vmatprep.subr.bf16.mxu0 %v93
  %113 = vmatpush1.bf16.msra.mxu0 %v92
  %114 = vmatprep.subr.bf16.mxu0 %v95
  %115 = vmatpush1.bf16.msra.mxu0 %v94
  %116 = vmatprep.subr.bf16.mxu0 %v97
  %117 = vmatpush1.bf16.msra.mxu0 %v96
  %118 = vmatprep.subr.bf16.mxu0 %v99
  %119 = vmatpush1.bf16.msra.mxu0 %v98
  %120 = vmatprep.subr.bf16.mxu0 0
  %121 = vmatpush1.bf16.msra.mxu0 0
  %122 = vmatprep.subr.bf16.mxu0 0
  %123 = vmatpush1.bf16.msra.mxu0 0
  %124 = vmatprep.subr.bf16.mxu0 0
  %125 = vmatpush1.bf16.msra.mxu0 0
  %126 = vmatprep.subr.bf16.mxu0 0
  %127 = vmatpush1.bf16.msra.mxu0 0
  %128 = vmatprep.subr.bf16.mxu0 0
  %129 = vmatpush1.bf16.msra.mxu0 0
  %130 = vmatprep.subr.bf16.mxu0 0
  %131 = vmatpush1.bf16.msra.mxu0 0
  %132 = vmatprep.subr.bf16.mxu0 0
  %133 = vmatpush1.bf16.msra.mxu0 0
  %134 = vmatprep.subr.bf16.mxu0 0
  %135 = vmatpush1.bf16.msra.mxu0 0
  %136 = vmatprep.subr.bf16.mxu0 0
  %137 = vmatpush1.bf16.msra.mxu0 0
  %138 = vmatprep.subr.bf16.mxu0 0
  %139 = vmatpush1.bf16.msra.mxu0 0
  %140 = vmatprep.subr.bf16.mxu0 0
  %141 = vmatpush1.bf16.msra.mxu0 0
  %142 = vmatprep.subr.bf16.mxu0 0
  %143 = vmatpush1.bf16.msra.mxu0 0
  %144 = vmatprep.mubr.bf16.mxu0 0
  %145 = vmatmul.mubr.bf16.gmra.mrb[0].mxu0 %v110
  %v146 = vpop.f32.mrb[0].mxu0
  %v147 = vadd.f32 0.0, %v146
  %v148 = vpop.f32.mrb[0].mxu0
  %v149 = vadd.f32 0.0, %v148
  %v150 = vpop.f32.mrb[0].mxu0
  %v151 = vpop.f32.mrb[0].mxu0
  %152 = vdwg.mxu0
  %v153 = vadd.f32 %v66, %v147
  %v154 = vadd.f32 %v67, %v149
  %v155 = vxor.u32 %v153, 2147483648
  %v156 = vmul.f32 %v155, 1.442695
  %v157 = vpow.pop %v156
  %v158 = vadd.f32 %v157, 1.0
  %v159 = vrcp.pop %v158
  %v160 = vmul.f32 1.0, %v159
  %v161 = vtanh.pop %v154
  %v162 = vxor.u32 %v154, 2147483648
  %v163 = vmul.f32 %v162, 1.442695
  %v164 = vpow.pop %v163
  %v165 = vadd.f32 %v164, 1.0
  %v166 = vrcp.pop %v165
  %v167 = vmul.f32 1.0, %v166
  %v168 = vmul.f32 %v160, 0.0
  %v169 = vmul.f32 %v160, %v161
  %171 = vrot.lane.b32.xlu0 %v169, 64
  %v172 = vpop.permute.xlu0 %171
  %v174 = vadd.f32 %v168, %v172
  %v175 = vtanh.pop %v174
  %v176 = vmul.f32 %v167, %v175
  %s177 = scalar_lea.vmem %s0, 8
  %v178 = vld [vmem:[%s177] sm:$0xff]
  %180 = vset.pattern.permute.xlu0 0
  %181 = vperm.xlu0 %180, %v178
  %v182 = vpop.permute.xlu0 %181
  %v184 = vmul.f32 %v182, %v46
  %v185 = vmul.f32 %v182, %v50
  %v186 = vadd.f32 %v184, %v59
  %v187 = vadd.f32 %v185, %v63
  %v188 = vpack.c.bf16 %v176, %v176
  %190 = vrot.lane.b32.xlu0 %v188, 64
  %v191 = vpop.permute.xlu0 %190
  %v193 = vsel %vm108, %v191, 0
  %195 = vmatprep.subr.bf16.mxu0 %v93
  %196 = vmatpush1.bf16.msra.mxu0 %v92
  %197 = vmatprep.subr.bf16.mxu0 %v95
  %198 = vmatpush1.bf16.msra.mxu0 %v94
  %199 = vmatprep.subr.bf16.mxu0 %v97
  %200 = vmatpush1.bf16.msra.mxu0 %v96
  %201 = vmatprep.subr.bf16.mxu0 %v99
  %202 = vmatpush1.bf16.msra.mxu0 %v98
  %203 = vmatprep.subr.bf16.mxu0 0
  %204 = vmatpush1.bf16.msra.mxu0 0
  %205 = vmatprep.subr.bf16.mxu0 0
  %206 = vmatpush1.bf16.msra.mxu0 0
  %207 = vmatprep.subr.bf16.mxu0 0
  %208 = vmatpush1.bf16.msra.mxu0 0
  %209 = vmatprep.subr.bf16.mxu0 0
  %210 = vmatpush1.bf16.msra.mxu0 0
  %211 = vmatprep.subr.bf16.mxu0 0
  %212 = vmatpush1.bf16.msra.mxu0 0
  %213 = vmatprep.subr.bf16.mxu0 0
  %214 = vmatpush1.bf16.msra.mxu0 0
  %215 = vmatprep.subr.bf16.mxu0 0
  %216 = vmatpush1.bf16.msra.mxu0 0
  %217 = vmatprep.subr.bf16.mxu0 0
  %218 = vmatpush1.bf16.msra.mxu0 0
  %219 = vmatprep.subr.bf16.mxu0 0
  %220 = vmatpush1.bf16.msra.mxu0 0
  %221 = vmatprep.subr.bf16.mxu0 0
  %222 = vmatpush1.bf16.msra.mxu0 0
  %223 = vmatprep.subr.bf16.mxu0 0
  %224 = vmatpush1.bf16.msra.mxu0 0
  %225 = vmatprep.subr.bf16.mxu0 0
  %226 = vmatpush1.bf16.msra.mxu0 0
  %227 = vmatprep.mubr.bf16.mxu0 0
  %228 = vmatmul.mubr.bf16.gmra.mrb[0].mxu0 %v193
  %v229 = vpop.f32.mrb[0].mxu0
  %v230 = vadd.f32 0.0, %v229
  %v231 = vpop.f32.mrb[0].mxu0
  %v232 = vadd.f32 0.0, %v231
  %v233 = vpop.f32.mrb[0].mxu0
  %v234 = vpop.f32.mrb[0].mxu0
  %235 = vdwg.mxu0
  %v236 = vadd.f32 %v186, %v230
  %v237 = vadd.f32 %v187, %v232
  %v238 = vxor.u32 %v236, 2147483648
  %v239 = vmul.f32 %v238, 1.442695
  %v240 = vpow.pop %v239
  %v241 = vadd.f32 %v240, 1.0
  %v242 = vrcp.pop %v241
  %v243 = vmul.f32 1.0, %v242
  %v244 = vtanh.pop %v237
  %v245 = vxor.u32 %v237, 2147483648
  %v246 = vmul.f32 %v245, 1.442695
  %v247 = vpow.pop %v246
  %v248 = vadd.f32 %v247, 1.0
  %v249 = vrcp.pop %v248
  %v250 = vmul.f32 1.0, %v249
  %v251 = vmul.f32 %v243, %v174
  %v252 = vmul.f32 %v243, %v244
  %254 = vrot.lane.b32.xlu0 %v252, 64
  %v255 = vpop.permute.xlu0 %254
  %v257 = vadd.f32 %v251, %v255
  %v258 = vtanh.pop %v257
  %v259 = vmul.f32 %v250, %v258
  %s260 = scalar_lea.vmem %s0, 16
  %v261 = vld [vmem:[%s260] sm:$0xff]
  %263 = vset.pattern.permute.xlu0 0
  %264 = vperm.xlu0 %263, %v261
  %v265 = vpop.permute.xlu0 %264
  %v267 = vmul.f32 %v265, %v46
  %v268 = vmul.f32 %v265, %v50
  %v269 = vadd.f32 %v267, %v59
  %v270 = vadd.f32 %v268, %v63
  %v271 = vpack.c.bf16 %v259, %v259
  %273 = vrot.lane.b32.xlu0 %v271, 64
  %v274 = vpop.permute.xlu0 %273
  %v276 = vsel %vm108, %v274, 0
  %278 = vmatprep.subr.bf16.mxu0 %v93
  %279 = vmatpush1.bf16.msra.mxu0 %v92
  %280 = vmatprep.subr.bf16.mxu0 %v95
  %281 = vmatpush1.bf16.msra.mxu0 %v94
  %282 = vmatprep.subr.bf16.mxu0 %v97
  %283 = vmatpush1.bf16.msra.mxu0 %v96
  %284 = vmatprep.subr.bf16.mxu0 %v99
  %285 = vmatpush1.bf16.msra.mxu0 %v98
  %286 = vmatprep.subr.bf16.mxu0 0
  %287 = vmatpush1.bf16.msra.mxu0 0
  %288 = vmatprep.subr.bf16.mxu0 0
  %289 = vmatpush1.bf16.msra.mxu0 0
  %290 = vmatprep.subr.bf16.mxu0 0
  %291 = vmatpush1.bf16.msra.mxu0 0
  %292 = vmatprep.subr.bf16.mxu0 0
  %293 = vmatpush1.bf16.msra.mxu0 0
  %294 = vmatprep.subr.bf16.mxu0 0
  %295 = vmatpush1.bf16.msra.mxu0 0
  %296 = vmatprep.subr.bf16.mxu0 0
  %297 = vmatpush1.bf16.msra.mxu0 0
  %298 = vmatprep.subr.bf16.mxu0 0
  %299 = vmatpush1.bf16.msra.mxu0 0
  %300 = vmatprep.subr.bf16.mxu0 0
  %301 = vmatpush1.bf16.msra.mxu0 0
  %302 = vmatprep.subr.bf16.mxu0 0
  %303 = vmatpush1.bf16.msra.mxu0 0
  %304 = vmatprep.subr.bf16.mxu0 0
  %305 = vmatpush1.bf16.msra.mxu0 0
  %306 = vmatprep.subr.bf16.mxu0 0
  %307 = vmatpush1.bf16.msra.mxu0 0
  %308 = vmatprep.subr.bf16.mxu0 0
  %309 = vmatpush1.bf16.msra.mxu0 0
  %310 = vmatprep.mubr.bf16.mxu0 0
  %311 = vmatmul.mubr.bf16.gmra.mrb[0].mxu0 %v276
  %v312 = vpop.f32.mrb[0].mxu0
  %v313 = vadd.f32 0.0, %v312
  %v314 = vpop.f32.mrb[0].mxu0
  %v315 = vadd.f32 0.0, %v314
  %v316 = vpop.f32.mrb[0].mxu0
  %v317 = vpop.f32.mrb[0].mxu0
  %318 = vdwg.mxu0
  %v319 = vadd.f32 %v269, %v313
  %v320 = vadd.f32 %v270, %v315
  %v321 = vxor.u32 %v319, 2147483648
  %v322 = vmul.f32 %v321, 1.442695
  %v323 = vpow.pop %v322
  %v324 = vadd.f32 %v323, 1.0
  %v325 = vrcp.pop %v324
  %v326 = vmul.f32 1.0, %v325
  %v327 = vtanh.pop %v320
  %v328 = vxor.u32 %v320, 2147483648
  %v329 = vmul.f32 %v328, 1.442695
  %v330 = vpow.pop %v329
  %v331 = vadd.f32 %v330, 1.0
  %v332 = vrcp.pop %v331
  %v333 = vmul.f32 1.0, %v332
  %v334 = vmul.f32 %v326, %v257
  %v335 = vmul.f32 %v326, %v327
  %337 = vrot.lane.b32.xlu0 %v335, 64
  %v338 = vpop.permute.xlu0 %337
  %v340 = vadd.f32 %v334, %v338
  %v341 = vtanh.pop %v340
  %v342 = vmul.f32 %v333, %v341
  %s343 = scalar_lea.vmem %s0, 24
  %v344 = vld [vmem:[%s343] sm:$0xff]
  %346 = vset.pattern.permute.xlu0 0
  %347 = vperm.xlu0 %346, %v344
  %v348 = vpop.permute.xlu0 %347
  %v350 = vmul.f32 %v348, %v46
  %v351 = vmul.f32 %v348, %v50
  %v352 = vadd.f32 %v350, %v59
  %v353 = vadd.f32 %v351, %v63
  %v354 = vpack.c.bf16 %v342, %v342
  %356 = vrot.lane.b32.xlu0 %v354, 64
  %v357 = vpop.permute.xlu0 %356
  %v359 = vsel %vm108, %v357, 0
  %361 = vmatprep.subr.bf16.mxu0 %v93
  %362 = vmatpush1.bf16.msra.mxu0 %v92
  %363 = vmatprep.subr.bf16.mxu0 %v95
  %364 = vmatpush1.bf16.msra.mxu0 %v94
  %365 = vmatprep.subr.bf16.mxu0 %v97
  %366 = vmatpush1.bf16.msra.mxu0 %v96
  %367 = vmatprep.subr.bf16.mxu0 %v99
  %368 = vmatpush1.bf16.msra.mxu0 %v98
  %369 = vmatprep.subr.bf16.mxu0 0
  %370 = vmatpush1.bf16.msra.mxu0 0
  %371 = vmatprep.subr.bf16.mxu0 0
  %372 = vmatpush1.bf16.msra.mxu0 0
  %373 = vmatprep.subr.bf16.mxu0 0
  %374 = vmatpush1.bf16.msra.mxu0 0
  %375 = vmatprep.subr.bf16.mxu0 0
  %376 = vmatpush1.bf16.msra.mxu0 0
  %377 = vmatprep.subr.bf16.mxu0 0
  %378 = vmatpush1.bf16.msra.mxu0 0
  %379 = vmatprep.subr.bf16.mxu0 0
  %380 = vmatpush1.bf16.msra.mxu0 0
  %381 = vmatprep.subr.bf16.mxu0 0
  %382 = vmatpush1.bf16.msra.mxu0 0
  %383 = vmatprep.subr.bf16.mxu0 0
  %384 = vmatpush1.bf16.msra.mxu0 0
  %385 = vmatprep.subr.bf16.mxu0 0
  %386 = vmatpush1.bf16.msra.mxu0 0
  %387 = vmatprep.subr.bf16.mxu0 0
  %388 = vmatpush1.bf16.msra.mxu0 0
  %389 = vmatprep.subr.bf16.mxu0 0
  %390 = vmatpush1.bf16.msra.mxu0 0
  %391 = vmatprep.subr.bf16.mxu0 0
  %392 = vmatpush1.bf16.msra.mxu0 0
  %393 = vmatprep.mubr.bf16.mxu0 0
  %394 = vmatmul.mubr.bf16.gmra.mrb[0].mxu0 %v359
  %v395 = vpop.f32.mrb[0].mxu0
  %v396 = vadd.f32 0.0, %v395
  %v397 = vpop.f32.mrb[0].mxu0
  %v398 = vadd.f32 0.0, %v397
  %v399 = vpop.f32.mrb[0].mxu0
  %v400 = vpop.f32.mrb[0].mxu0
  %401 = vdwg.mxu0
  %v402 = vadd.f32 %v352, %v396
  %v403 = vadd.f32 %v353, %v398
  %v404 = vxor.u32 %v402, 2147483648
  %v405 = vmul.f32 %v404, 1.442695
  %v406 = vpow.pop %v405
  %v407 = vadd.f32 %v406, 1.0
  %v408 = vrcp.pop %v407
  %v409 = vmul.f32 1.0, %v408
  %v410 = vtanh.pop %v403
  %v411 = vxor.u32 %v403, 2147483648
  %v412 = vmul.f32 %v411, 1.442695
  %v413 = vpow.pop %v412
  %v414 = vadd.f32 %v413, 1.0
  %v415 = vrcp.pop %v414
  %v416 = vmul.f32 1.0, %v415
  %v417 = vmul.f32 %v409, %v340
  %v418 = vmul.f32 %v409, %v410
  %420 = vrot.lane.b32.xlu0 %v418, 64
  %v421 = vpop.permute.xlu0 %420
  %v423 = vadd.f32 %v417, %v421
  %v424 = vtanh.pop %v423
  %v425 = vmul.f32 %v416, %v424
  %s426 = scalar_lea.vmem %s0, 32
  %v427 = vld [vmem:[%s426] sm:$0xff]
  %429 = vset.pattern.permute.xlu0 0
  %430 = vperm.xlu0 %429, %v427
  %v431 = vpop.permute.xlu0 %430
  %v433 = vmul.f32 %v431, %v46
  %v434 = vmul.f32 %v431, %v50
  %v435 = vadd.f32 %v433, %v59
  %v436 = vadd.f32 %v434, %v63
  %v437 = vpack.c.bf16 %v425, %v425
  %439 = vrot.lane.b32.xlu0 %v437, 64
  %v440 = vpop.permute.xlu0 %439
  %v442 = vsel %vm108, %v440, 0
  %444 = vmatprep.subr.bf16.mxu0 %v93
  %445 = vmatpush1.bf16.msra.mxu0 %v92
  %446 = vmatprep.subr.bf16.mxu0 %v95
  %447 = vmatpush1.bf16.msra.mxu0 %v94
  %448 = vmatprep.subr.bf16.mxu0 %v97
  %449 = vmatpush1.bf16.msra.mxu0 %v96
  %450 = vmatprep.subr.bf16.mxu0 %v99
  %451 = vmatpush1.bf16.msra.mxu0 %v98
  %452 = vmatprep.subr.bf16.mxu0 0
  %453 = vmatpush1.bf16.msra.mxu0 0
  %454 = vmatprep.subr.bf16.mxu0 0
  %455 = vmatpush1.bf16.msra.mxu0 0
  %456 = vmatprep.subr.bf16.mxu0 0
  %457 = vmatpush1.bf16.msra.mxu0 0
  %458 = vmatprep.subr.bf16.mxu0 0
  %459 = vmatpush1.bf16.msra.mxu0 0
  %460 = vmatprep.subr.bf16.mxu0 0
  %461 = vmatpush1.bf16.msra.mxu0 0
  %462 = vmatprep.subr.bf16.mxu0 0
  %463 = vmatpush1.bf16.msra.mxu0 0
  %464 = vmatprep.subr.bf16.mxu0 0
  %465 = vmatpush1.bf16.msra.mxu0 0
  %466 = vmatprep.subr.bf16.mxu0 0
  %467 = vmatpush1.bf16.msra.mxu0 0
  %468 = vmatprep.subr.bf16.mxu0 0
  %469 = vmatpush1.bf16.msra.mxu0 0
  %470 = vmatprep.subr.bf16.mxu0 0
  %471 = vmatpush1.bf16.msra.mxu0 0
  %472 = vmatprep.subr.bf16.mxu0 0
  %473 = vmatpush1.bf16.msra.mxu0 0
  %474 = vmatprep.subr.bf16.mxu0 0
  %475 = vmatpush1.bf16.msra.mxu0 0
  %476 = vmatprep.mubr.bf16.mxu0 0
  %477 = vmatmul.mubr.bf16.gmra.mrb[0].mxu0 %v442
  %v478 = vpop.f32.mrb[0].mxu0
  %v479 = vadd.f32 0.0, %v478
  %v480 = vpop.f32.mrb[0].mxu0
  %v481 = vadd.f32 0.0, %v480
  %v482 = vpop.f32.mrb[0].mxu0
  %v483 = vpop.f32.mrb[0].mxu0
  %484 = vdwg.mxu0
  %v485 = vadd.f32 %v435, %v479
  %v486 = vadd.f32 %v436, %v481
  %v487 = vxor.u32 %v485, 2147483648
  %v488 = vmul.f32 %v487, 1.442695
  %v489 = vpow.pop %v488
  %v490 = vadd.f32 %v489, 1.0
  %v491 = vrcp.pop %v490
  %v492 = vmul.f32 1.0, %v491
  %v493 = vtanh.pop %v486
  %v494 = vxor.u32 %v486, 2147483648
  %v495 = vmul.f32 %v494, 1.442695
  %v496 = vpow.pop %v495
  %v497 = vadd.f32 %v496, 1.0
  %v498 = vrcp.pop %v497
  %v499 = vmul.f32 1.0, %v498
  %v500 = vmul.f32 %v492, %v423
  %v501 = vmul.f32 %v492, %v493
  %503 = vrot.lane.b32.xlu0 %v501, 64
  %v504 = vpop.permute.xlu0 %503
  %v506 = vadd.f32 %v500, %v504
  %v507 = vtanh.pop %v506
  %v508 = vmul.f32 %v499, %v507
  %s509 = scalar_lea.vmem %s0, 40
  %v510 = vld [vmem:[%s509] sm:$0xff]
  %512 = vset.pattern.permute.xlu0 0
  %513 = vperm.xlu0 %512, %v510
  %v514 = vpop.permute.xlu0 %513
  %v516 = vmul.f32 %v514, %v46
  %v517 = vmul.f32 %v514, %v50
  %v518 = vadd.f32 %v516, %v59
  %v519 = vadd.f32 %v517, %v63
  %v520 = vpack.c.bf16 %v508, %v508
  %522 = vrot.lane.b32.xlu0 %v520, 64
  %v523 = vpop.permute.xlu0 %522
  %v525 = vsel %vm108, %v523, 0
  %527 = vmatprep.subr.bf16.mxu0 %v93
  %528 = vmatpush1.bf16.msra.mxu0 %v92
  %529 = vmatprep.subr.bf16.mxu0 %v95
  %530 = vmatpush1.bf16.msra.mxu0 %v94
  %531 = vmatprep.subr.bf16.mxu0 %v97
  %532 = vmatpush1.bf16.msra.mxu0 %v96
  %533 = vmatprep.subr.bf16.mxu0 %v99
  %534 = vmatpush1.bf16.msra.mxu0 %v98
  %535 = vmatprep.subr.bf16.mxu0 0
  %536 = vmatpush1.bf16.msra.mxu0 0
  %537 = vmatprep.subr.bf16.mxu0 0
  %538 = vmatpush1.bf16.msra.mxu0 0
  %539 = vmatprep.subr.bf16.mxu0 0
  %540 = vmatpush1.bf16.msra.mxu0 0
  %541 = vmatprep.subr.bf16.mxu0 0
  %542 = vmatpush1.bf16.msra.mxu0 0
  %543 = vmatprep.subr.bf16.mxu0 0
  %544 = vmatpush1.bf16.msra.mxu0 0
  %545 = vmatprep.subr.bf16.mxu0 0
  %546 = vmatpush1.bf16.msra.mxu0 0
  %547 = vmatprep.subr.bf16.mxu0 0
  %548 = vmatpush1.bf16.msra.mxu0 0
  %549 = vmatprep.subr.bf16.mxu0 0
  %550 = vmatpush1.bf16.msra.mxu0 0
  %551 = vmatprep.subr.bf16.mxu0 0
  %552 = vmatpush1.bf16.msra.mxu0 0
  %553 = vmatprep.subr.bf16.mxu0 0
  %554 = vmatpush1.bf16.msra.mxu0 0
  %555 = vmatprep.subr.bf16.mxu0 0
  %556 = vmatpush1.bf16.msra.mxu0 0
  %557 = vmatprep.subr.bf16.mxu0 0
  %558 = vmatpush1.bf16.msra.mxu0 0
  %559 = vmatprep.mubr.bf16.mxu0 0
  %560 = vmatmul.mubr.bf16.gmra.mrb[0].mxu0 %v525
  %v561 = vpop.f32.mrb[0].mxu0
  %v562 = vadd.f32 0.0, %v561
  %v563 = vpop.f32.mrb[0].mxu0
  %v564 = vadd.f32 0.0, %v563
  %v565 = vpop.f32.mrb[0].mxu0
  %v566 = vpop.f32.mrb[0].mxu0
  %567 = vdwg.mxu0
  %v568 = vadd.f32 %v518, %v562
  %v569 = vadd.f32 %v519, %v564
  %v570 = vxor.u32 %v568, 2147483648
  %v571 = vmul.f32 %v570, 1.442695
  %v572 = vpow.pop %v571
  %v573 = vadd.f32 %v572, 1.0
  %v574 = vrcp.pop %v573
  %v575 = vmul.f32 1.0, %v574
  %v576 = vtanh.pop %v569
  %v577 = vxor.u32 %v569, 2147483648
  %v578 = vmul.f32 %v577, 1.442695
  %v579 = vpow.pop %v578
  %v580 = vadd.f32 %v579, 1.0
  %v581 = vrcp.pop %v580
  %v582 = vmul.f32 1.0, %v581
  %v583 = vmul.f32 %v575, %v506
  %v584 = vmul.f32 %v575, %v576
  %586 = vrot.lane.b32.xlu0 %v584, 64
  %v587 = vpop.permute.xlu0 %586
  %v589 = vadd.f32 %v583, %v587
  %v590 = vtanh.pop %v589
  %v591 = vmul.f32 %v582, %v590
  %s592 = scalar_lea.vmem %s0, 48
  %v593 = vld [vmem:[%s592] sm:$0xff]
  %595 = vset.pattern.permute.xlu0 0
  %596 = vperm.xlu0 %595, %v593
  %v597 = vpop.permute.xlu0 %596
  %v599 = vmul.f32 %v597, %v46
  %v600 = vmul.f32 %v597, %v50
  %v601 = vadd.f32 %v599, %v59
  %v602 = vadd.f32 %v600, %v63
  %v603 = vpack.c.bf16 %v591, %v591
  %605 = vrot.lane.b32.xlu0 %v603, 64
  %v606 = vpop.permute.xlu0 %605
  %v608 = vsel %vm108, %v606, 0
  %610 = vmatprep.subr.bf16.mxu0 %v93
  %611 = vmatpush1.bf16.msra.mxu0 %v92
  %612 = vmatprep.subr.bf16.mxu0 %v95
  %613 = vmatpush1.bf16.msra.mxu0 %v94
  %614 = vmatprep.subr.bf16.mxu0 %v97
  %615 = vmatpush1.bf16.msra.mxu0 %v96
  %616 = vmatprep.subr.bf16.mxu0 %v99
  %617 = vmatpush1.bf16.msra.mxu0 %v98
  %618 = vmatprep.subr.bf16.mxu0 0
  %619 = vmatpush1.bf16.msra.mxu0 0
  %620 = vmatprep.subr.bf16.mxu0 0
  %621 = vmatpush1.bf16.msra.mxu0 0
  %622 = vmatprep.subr.bf16.mxu0 0
  %623 = vmatpush1.bf16.msra.mxu0 0
  %624 = vmatprep.subr.bf16.mxu0 0
  %625 = vmatpush1.bf16.msra.mxu0 0
  %626 = vmatprep.subr.bf16.mxu0 0
  %627 = vmatpush1.bf16.msra.mxu0 0
  %628 = vmatprep.subr.bf16.mxu0 0
  %629 = vmatpush1.bf16.msra.mxu0 0
  %630 = vmatprep.subr.bf16.mxu0 0
  %631 = vmatpush1.bf16.msra.mxu0 0
  %632 = vmatprep.subr.bf16.mxu0 0
  %633 = vmatpush1.bf16.msra.mxu0 0
  %634 = vmatprep.subr.bf16.mxu0 0
  %635 = vmatpush1.bf16.msra.mxu0 0
  %636 = vmatprep.subr.bf16.mxu0 0
  %637 = vmatpush1.bf16.msra.mxu0 0
  %638 = vmatprep.subr.bf16.mxu0 0
  %639 = vmatpush1.bf16.msra.mxu0 0
  %640 = vmatprep.subr.bf16.mxu0 0
  %641 = vmatpush1.bf16.msra.mxu0 0
  %642 = vmatprep.mubr.bf16.mxu0 0
  %643 = vmatmul.mubr.bf16.gmra.mrb[0].mxu0 %v608
  %v644 = vpop.f32.mrb[0].mxu0
  %v645 = vadd.f32 0.0, %v644
  %v646 = vpop.f32.mrb[0].mxu0
  %v647 = vadd.f32 0.0, %v646
  %v648 = vpop.f32.mrb[0].mxu0
  %v649 = vpop.f32.mrb[0].mxu0
  %650 = vdwg.mxu0
  %v651 = vadd.f32 %v601, %v645
  %v652 = vadd.f32 %v602, %v647
  %v653 = vxor.u32 %v651, 2147483648
  %v654 = vmul.f32 %v653, 1.442695
  %v655 = vpow.pop %v654
  %v656 = vadd.f32 %v655, 1.0
  %v657 = vrcp.pop %v656
  %v658 = vmul.f32 1.0, %v657
  %v659 = vtanh.pop %v652
  %v660 = vxor.u32 %v652, 2147483648
  %v661 = vmul.f32 %v660, 1.442695
  %v662 = vpow.pop %v661
  %v663 = vadd.f32 %v662, 1.0
  %v664 = vrcp.pop %v663
  %v665 = vmul.f32 1.0, %v664
  %v666 = vmul.f32 %v658, %v589
  %v667 = vmul.f32 %v658, %v659
  %669 = vrot.lane.b32.xlu0 %v667, 64
  %v670 = vpop.permute.xlu0 %669
  %v672 = vadd.f32 %v666, %v670
  %v673 = vtanh.pop %v672
  %v674 = vmul.f32 %v665, %v673
  %s675 = scalar_lea.vmem %s0, 56
  %v676 = vld [vmem:[%s675] sm:$0xff]
  %678 = vset.pattern.permute.xlu0 0
  %679 = vperm.xlu0 %678, %v676
  %v680 = vpop.permute.xlu0 %679
  %v682 = vmul.f32 %v680, %v46
  %v683 = vmul.f32 %v680, %v50
  %v684 = vadd.f32 %v682, %v59
  %v685 = vadd.f32 %v683, %v63
  %v686 = vpack.c.bf16 %v674, %v674
  %688 = vrot.lane.b32.xlu0 %v686, 64
  %v689 = vpop.permute.xlu0 %688
  %v691 = vsel %vm108, %v689, 0
  %693 = vmatprep.subr.bf16.mxu0 %v93
  %694 = vmatpush1.bf16.msra.mxu0 %v92
  %695 = vmatprep.subr.bf16.mxu0 %v95
  %696 = vmatpush1.bf16.msra.mxu0 %v94
  %697 = vmatprep.subr.bf16.mxu0 %v97
  %698 = vmatpush1.bf16.msra.mxu0 %v96
  %699 = vmatprep.subr.bf16.mxu0 %v99
  %700 = vmatpush1.bf16.msra.mxu0 %v98
  %701 = vmatprep.subr.bf16.mxu0 0
  %702 = vmatpush1.bf16.msra.mxu0 0
  %703 = vmatprep.subr.bf16.mxu0 0
  %704 = vmatpush1.bf16.msra.mxu0 0
  %705 = vmatprep.subr.bf16.mxu0 0
  %706 = vmatpush1.bf16.msra.mxu0 0
  %707 = vmatprep.subr.bf16.mxu0 0
  %708 = vmatpush1.bf16.msra.mxu0 0
  %709 = vmatprep.subr.bf16.mxu0 0
  %710 = vmatpush1.bf16.msra.mxu0 0
  %711 = vmatprep.subr.bf16.mxu0 0
  %712 = vmatpush1.bf16.msra.mxu0 0
  %713 = vmatprep.subr.bf16.mxu0 0
  %714 = vmatpush1.bf16.msra.mxu0 0
  %715 = vmatprep.subr.bf16.mxu0 0
  %716 = vmatpush1.bf16.msra.mxu0 0
  %717 = vmatprep.subr.bf16.mxu0 0
  %718 = vmatpush1.bf16.msra.mxu0 0
  %719 = vmatprep.subr.bf16.mxu0 0
  %720 = vmatpush1.bf16.msra.mxu0 0
  %721 = vmatprep.subr.bf16.mxu0 0
  %722 = vmatpush1.bf16.msra.mxu0 0
  %723 = vmatprep.subr.bf16.mxu0 0
  %724 = vmatpush1.bf16.msra.mxu0 0
  %725 = vmatprep.mubr.bf16.mxu0 0
  %726 = vmatmul.mubr.bf16.gmra.mrb[0].mxu0 %v691
  %v727 = vpop.f32.mrb[0].mxu0
  %v728 = vadd.f32 0.0, %v727
  %v729 = vpop.f32.mrb[0].mxu0
  %v730 = vadd.f32 0.0, %v729
  %v731 = vpop.f32.mrb[0].mxu0
  %v732 = vpop.f32.mrb[0].mxu0
  %733 = vdwg.mxu0
  %v734 = vadd.f32 %v684, %v728
  %v735 = vadd.f32 %v685, %v730
  %v736 = vxor.u32 %v734, 2147483648
  %v737 = vmul.f32 %v736, 1.442695
  %v738 = vpow.pop %v737
  %v739 = vadd.f32 %v738, 1.0
  %v740 = vrcp.pop %v739
  %v741 = vmul.f32 1.0, %v740
  %v742 = vtanh.pop %v735
  %v743 = vxor.u32 %v735, 2147483648
  %v744 = vmul.f32 %v743, 1.442695
  %v745 = vpow.pop %v744
  %v746 = vadd.f32 %v745, 1.0
  %v747 = vrcp.pop %v746
  %v748 = vmul.f32 1.0, %v747
  %v749 = vmul.f32 %v741, %v672
  %v750 = vmul.f32 %v741, %v742
  %752 = vrot.lane.b32.xlu0 %v750, 64
  %v753 = vpop.permute.xlu0 %752
  %v755 = vadd.f32 %v749, %v753
  %v756 = vtanh.pop %v755
  %v757 = vmul.f32 %v748, %v756
  %v758 = vld [vmem:[%s4] sm:$0x1]
  %v760 = vlaneseq
  %v761 = vshrl.u32 %v760, 7
  %v762 = vsub.s32 0, %v761
  %v763 = vrot.slane %v758, %v762
  %764 = vrot.lane.b32.xlu0 %v763, 64
  %v765 = vpop.permute.xlu0 %764
  %v767 = vmul.f32 %v757, %v765
  %769 = vrot.lane.b32.xlu0 %v767, 64
  %v770 = vpop.permute.xlu0 %769
  %v772 = vsel %vm108, %v770, 0.0
  %773 = vadd.xlane.f32.xlu0 %v772
  %v774 = vpop.xlane.xlu0 %773
  %v775 = vld [vmem:[#allocation2] sm:$0x1]
  %v777 = vlaneseq
  %v778 = vshrl.u32 %v777, 7
  %v779 = vsub.s32 0, %v778
  %v780 = vrot.slane %v775, %v779
  %v782 = vadd.f32 %v774, %v780
  %vm783 = vcmask 7168
  %784 = vst.msk [vmem:[%s6] sm:$0xff] %vm783, %v782
  // Predicated region
  $region26: #{tpu_custom_call.1} parent=0 // pred_check
    _
  $region27: #{tpu_custom_call.1} parent=0 // pred_check_branch
    %786 = sbr.rel (0) target = $region29
  $region28: #{tpu_custom_call.1} parent=0 // pred_region
    _
  $region29: #{tpu_custom_call.1} parent=0 // pred_fallthru
    _
  // Predicated region
  $region30: #{tpu_custom_call.1} parent=0 // pred_check
    _
  $region31: #{tpu_custom_call.1} parent=0 // pred_check_branch
    %788 = sbr.rel (0) target = $region33
  $region32: #{tpu_custom_call.1} parent=0 // pred_region
    _
  $region33: #{tpu_custom_call.1} parent=0 // pred_fallthru
    _

</llo_original>
